<compile_context>
chip_gen: v7x
topology: tpu7x:2x2x1
jax: 0.10.0
libtpu: 0.0.40
codegen_flags: <defaults>
</compile_context>

<pallas_src>
import math
from functools import lru_cache

import numpy as np
import jax
import jax.numpy as jnp
from jax.experimental import pallas as pl
from jax.experimental.pallas import tpu as pltpu

# ----------------------------------------------------------------------------
# sym8 filter bank (pywt convention: stored coeffs = rec_lo; dec_lo = reversed;
# rec_hi = QMF(rec_lo); dec_hi = reversed(rec_hi)).
# ----------------------------------------------------------------------------
_F = 16
_SYM8_REC_LO = np.array([
    -0.0033824159510061256, -0.00054213233179114812, 0.031695087811492981,
    0.0076074873249176054, -0.14329423835080971, -0.061273359067658524,
    0.48135965125837221, 0.77718575170052351, 0.36444189483533893,
    -0.051945838107709037, -0.027219029917056003, 0.049137179673607506,
    0.0038087520138906151, -0.014952258337048231, -0.00030292051472413308,
    0.0018899503327594609], dtype=np.float64)

_REC_LO = _SYM8_REC_LO
_DEC_LO = _REC_LO[::-1].copy()
_REC_HI = np.array([((-1.0) ** k) * _REC_LO[_F - 1 - k] for k in range(_F)],
                   dtype=np.float64)
_DEC_HI = _REC_HI[::-1].copy()


def _round_up(n, m):
    return ((n + m - 1) // m) * m


def _pick_tile(dim_pad, max_tile):
    """Largest multiple of 128 <= max_tile that divides dim_pad (a mult of 128)."""
    t = min(max_tile, dim_pad)
    t -= t % 128
    t = max(t, 128)
    while dim_pad % t != 0:
        t -= 128
    return t


def _sym_ext_index(m, n):
    # pywt 'symmetric' (half-sample) boundary extension, folded as needed.
    while m < 0 or m >= n:
        if m < 0:
            m = -m - 1
        else:
            m = 2 * n - 1 - m
    return m


def _analysis_matrices(n_in):
    # pywt dwt (symmetric mode):  out[o] = sum_j filter[j] * x_sym(2*o + 1 - j)
    n_out = (n_in + _F - 1) // 2
    a_lo = np.zeros((n_out, n_in), dtype=np.float64)
    a_hi = np.zeros((n_out, n_in), dtype=np.float64)
    for o in range(n_out):
        for j in range(_F):
            idx = _sym_ext_index(2 * o + 1 - j, n_in)
            a_lo[o, idx] += _DEC_LO[j]
            a_hi[o, idx] += _DEC_HI[j]
    return a_lo, a_hi


def _synthesis_matrices(n_c):
    # pywt idwt: rec[n] = sum_i cA[i]*rec_lo[n+F-2-2i] + cD[i]*rec_hi[n+F-2-2i]
    n_rec = 2 * n_c - _F + 2
    s_lo = np.zeros((n_rec, n_c), dtype=np.float64)
    s_hi = np.zeros((n_rec, n_c), dtype=np.float64)
    for n in range(n_rec):
        for i in range(n_c):
            t = n + _F - 2 - 2 * i
            if 0 <= t < _F:
                s_lo[n, i] = _REC_LO[t]
                s_hi[n, i] = _REC_HI[t]
    return s_lo, s_hi


def _build_wavedec_matrix(length, dec_lev):
    m_a = np.eye(length, dtype=np.float64)
    details = []
    for _ in range(dec_lev):
        a_lo, a_hi = _analysis_matrices(m_a.shape[0])
        details.append(a_hi @ m_a)
        m_a = a_lo @ m_a
    blocks = [m_a] + details[::-1]          # [cA_n, cD_n, ..., cD_1]
    w_dec = np.vstack(blocks)
    seg_lens = [b.shape[0] for b in blocks]
    return w_dec, seg_lens


def _build_waverec_matrix(seg_lens):
    c_total = int(np.sum(seg_lens))
    offsets = np.concatenate([[0], np.cumsum(seg_lens)]).astype(int)

    def selector(i):
        s = np.zeros((seg_lens[i], c_total), dtype=np.float64)
        s[np.arange(seg_lens[i]), offsets[i] + np.arange(seg_lens[i])] = 1.0
        return s

    r_a = selector(0)                        # coeff vector -> cA_n
    for k in range(1, len(seg_lens)):        # cD_n, cD_{n-1}, ..., cD_1
        r_d = selector(k)
        if r_a.shape[0] == r_d.shape[0] + 1:  # pywt.waverec length fix-up
            r_a = r_a[:-1]
        assert r_a.shape[0] == r_d.shape[0]
        s_lo, s_hi = _synthesis_matrices(r_d.shape[0])
        r_a = s_lo @ r_a + s_hi @ r_d
    return r_a


def _build_tile_table(w_np, tk, tn):
    """Per output-column-tile list of non-zero K tiles of the banded operator.

    Returns (ktab_flat[int32, nt*kmax], kcnt[int32, nt], kmax).  Padded entries
    repeat the last valid tile index (Pallas skips re-DMA of an unchanged block
    index; the matmul itself is pl.when-guarded)."""
    kt = w_np.shape[0] // tk
    nt = w_np.shape[1] // tn
    lists = []
    for j in range(nt):
        cols = w_np[:, j * tn:(j + 1) * tn]
        ks = [k for k in range(kt)
              if np.any(cols[k * tk:(k + 1) * tk, :] != 0.0)]
        lists.append(ks)
    kmax = max(1, max((len(ks) for ks in lists), default=1))
    ktab = np.zeros((nt, kmax), dtype=np.int32)
    kcnt = np.zeros((nt,), dtype=np.int32)
    for j, ks in enumerate(lists):
        kcnt[j] = len(ks)
        if ks:
            ktab[j, :len(ks)] = ks
            ktab[j, len(ks):] = ks[-1]
    return (jnp.asarray(ktab.reshape(-1), dtype=jnp.int32),
            jnp.asarray(kcnt, dtype=jnp.int32),
            int(kmax))


# ----------------------------------------------------------------------------
# Pallas kernel: banded GEMV  out(1, n_pad) = x(1, k_pad) @ W(k_pad, n_pad)
# with zero-tile skipping and direct f32 accumulation into the output block.
# ----------------------------------------------------------------------------
def _banded_gemv_kernel(ktab_ref, kcnt_ref, x_ref, w_ref, o_ref):
    j = pl.program_id(0)
    kk = pl.program_id(1)

    @pl.when(kk == 0)
    def _():
        o_ref[...] = jnp.zeros_like(o_ref)

    @pl.when(kk < kcnt_ref[j])
    def _():
        # bf16 x bf16 -> f32 on the MXU; only the tiny activation tile is cast.
        o_ref[...] += jnp.dot(x_ref[...].astype(w_ref.dtype), w_ref[...],
                              preferred_element_type=jnp.float32)


def _make_banded_gemv_call(n_pad, tk, tn, kmax, vmem_limit_bytes):
    # index_maps receive (j, kk, *scalar_prefetch_refs); ktab is flattened 1-D
    # (SMEM-friendly) and maps pipeline step kk -> actual K block index.
    x_map = lambda j, kk, ktab, kcnt: (0, ktab[j * kmax + kk])
    w_map = lambda j, kk, ktab, kcnt: (ktab[j * kmax + kk], j)
    o_map = lambda j, kk, ktab, kcnt: (0, j)
    return pl.pallas_call(
        _banded_gemv_kernel,
        out_shape=jax.ShapeDtypeStruct((1, n_pad), jnp.float32),
        grid_spec=pltpu.PrefetchScalarGridSpec(
            num_scalar_prefetch=2,
            grid=(n_pad // tn, kmax),
            in_specs=[pl.BlockSpec((1, tk), x_map),
                      pl.BlockSpec((tk, tn), w_map)],
            out_specs=pl.BlockSpec((1, tn), o_map)),
        compiler_params=pltpu.CompilerParams(
            dimension_semantics=("parallel", "arbitrary"),
            vmem_limit_bytes=vmem_limit_bytes),
    )


def _tile_caps():
    """Generation-aware (tk_cap, tn_cap, vmem_limit_bytes)."""
    vmem_bytes = 128 * 1024 * 1024
    try:
        info = pltpu.get_tpu_info()
        vmem_bytes = int(getattr(info, "vmem_capacity_bytes", vmem_bytes))
    except Exception:
        pass
    if vmem_bytes <= 64 * 1024 * 1024:
        # v7x-class (64 MiB physical VMEM): cap double-buffered footprint.
        return 2048, 1024, 48 * 1024 * 1024
    # v5e / v6e (128 MiB VMEM): bigger tiles -> fewer grid steps, longer DMAs.
    return 2048, 2048, 64 * 1024 * 1024


# ----------------------------------------------------------------------------
# Forward-pass factory (mirrors dropping_noise.forward); build once, jit once.
# ----------------------------------------------------------------------------
def make_dropping_noise(shape, dec_lev, weight_dtype=jnp.bfloat16):
    b, t, n = shape
    length0 = b * t * n

    # Dense (but banded) wavedec / waverec operators, host-built once.
    w_dec, seg_lens = _build_wavedec_matrix(length0, dec_lev)
    c_total = w_dec.shape[0]
    w_rec = _build_waverec_matrix(seg_lens)
    if w_rec.shape[0] > length0:          # pywt over-produces by 1 for odd L
        w_rec = w_rec[:length0]
    assert w_rec.shape == (length0, c_total)

    lp = _round_up(length0, 128)
    cp = _round_up(c_total, 128)

    tk_cap, tn_cap, vmem_limit = _tile_caps()
    tk1 = _pick_tile(lp, tk_cap)   # kernel 1 reduction (signal axis)
    tn1 = _pick_tile(cp, tn_cap)   # kernel 1 output cols (coeff axis)
    tk2 = _pick_tile(cp, tk_cap)   # kernel 2 reduction (coeff axis)
    tn2 = _pick_tile(lp, tn_cap)   # kernel 2 output cols (signal axis)

    wdect_np = np.zeros((lp, cp), np.float32)
    wdect_np[:length0, :c_total] = w_dec.T.astype(np.float32)
    wrect_np = np.zeros((cp, lp), np.float32)
    wrect_np[:c_total, :length0] = w_rec.T.astype(np.float32)

    # Tile-occupancy tables for zero-tile skipping (built on the f32 masters).
    ktab1, kcnt1, kmax1 = _build_tile_table(wdect_np, tk1, tn1)
    ktab2, kcnt2, kmax2 = _build_tile_table(wrect_np, tk2, tn2)

    # bf16 weights in HBM (halves the weight stream, which is the roofline).
    # NOTE: set weight_dtype=jnp.float32 for bit-tighter pywt agreement.
    wdect = jnp.asarray(wdect_np, dtype=weight_dtype)
    wrect = jnp.asarray(wrect_np, dtype=weight_dtype)

    ca_len = int(seg_lens[0])
    n_d1 = int(seg_lens[-1])
    thr_scale = math.sqrt(2.0 * math.log(float(length0))) / 0.6745

    detail_np = np.zeros((1, cp), dtype=bool)
    detail_np[0, ca_len:c_total] = True     # detail coeffs; cA & padding False
    detail_mask = jnp.asarray(detail_np)

    dwt_call = _make_banded_gemv_call(cp, tk1, tn1, kmax1, vmem_limit)
    idwt_call = _make_banded_gemv_call(lp, tk2, tn2, kmax2, vmem_limit)

    a = 0.85

    @jax.jit
    def forward(x):
        x_flat = jnp.reshape(x, (-1,)).astype(jnp.float32)
        x_row = jnp.pad(x_flat, (0, lp - length0)).reshape(1, lp)

        # Kernel 1: multi-level wavelet decomposition (banded MXU GEMV).
        coeffs = dwt_call(ktab1, kcnt1, x_row, wdect)          # (1, cp) f32

        # Universal threshold from the finest detail band cD_1 (last segment).
        # TODO(synk): exact median (XLA sort) sits serially between the two
        # pallas_calls; no clean Pallas lowering for an order statistic.
        cd1 = coeffs[0, c_total - n_d1:c_total]
        median_cd1 = jnp.median(jnp.abs(cd1))
        lam = (median_cd1 * thr_scale).astype(jnp.float32)

        # Soft-threshold the detail coefficients once (hoisted out of the
        # reconstruction kernel's reduction loop; fuses with the lam step).
        absc = jnp.abs(coeffs)
        soft = jnp.sign(coeffs) * (absc - a * lam)
        thresholded = jnp.where(absc >= lam, soft, jnp.zeros_like(coeffs))
        coeffs_t = jnp.where(detail_mask, thresholded, coeffs)

        # Kernel 2: multi-level reconstruction (banded MXU GEMV).
        out_row = idwt_call(ktab2, kcnt2, coeffs_t, wrect)     # (1, lp) f32
        return jnp.reshape(out_row[0, :length0], (b, t, n))

    return forward


@lru_cache(maxsize=None)
def _cached_forward(shape, dec_lev):
    return make_dropping_noise(shape, dec_lev)


def dropping_noise_forward(x, dec_lev):
    return _cached_forward(tuple(int(s) for s in x.shape), int(dec_lev))(x)


if __name__ == "__main__":
    B, T, N = 2, 8, 16          # small shapes consistent with x.shape == (B, T, N)
    DEC_LEV = 3

    key = jax.random.PRNGKey(0)
    clean = jnp.sin(0.1 * jnp.arange(B * T * N, dtype=jnp.float32)).reshape(B, T, N)
    noise = 0.1 * jax.random.normal(key, (B, T, N), dtype=jnp.float32)
    x = clean + noise

    y = dropping_noise_forward(x, DEC_LEV)
    y = jax.block_until_ready(y)

    assert y.shape == (B, T, N)
    assert bool(jnp.all(jnp.isfinite(y)))
    print("KERNEL_OK")
</pallas_src>

<mosaic_0001>
module attributes {stable_mosaic.version = 11 : i64} {
  func.func @_banded_gemv_kernel(%arg0: i32, %arg1: i32, %arg2: memref<1xi32, #tpu.memory_space<smem>>, %arg3: memref<1xi32, #tpu.memory_space<smem>>, %arg4: memref<1x256xf32, #tpu.memory_space<vmem>>, %arg5: memref<256x384xbf16, #tpu.memory_space<vmem>>, %arg6: memref<1x384xf32, #tpu.memory_space<vmem>>) attributes {dimension_semantics = [#tpu.dimension_semantics<parallel>, #tpu.dimension_semantics<arbitrary>], iteration_bounds = array<i64: 1, 1>, scalar_prefetch = 2 : i64, scratch_operands = 0 : i64, tpu.core_type = #tpu.core_type<tc>, window_params = [{transform_indices = @transform_0, window_bounds = array<i64: 1, 256>}, {transform_indices = @transform_1, window_bounds = array<i64: 256, 384>}, {transform_indices = @transform_2, window_bounds = array<i64: 1, 384>}]} {
    %c0_i32 = arith.constant 0 : i32
    %0 = arith.cmpi eq, %arg1, %c0_i32 : i32
    %1 = arith.extui %0 : i1 to i32
    %c0_i32_0 = arith.constant 0 : i32
    %2 = arith.cmpi ne, %1, %c0_i32_0 : i32
    scf.if %2 {
      %cst = arith.constant 0.000000e+00 : f32
      %8 = vector.broadcast %cst : f32 to vector<1x384xf32>
      %c0 = arith.constant 0 : index
      %c0_2 = arith.constant 0 : index
      %9 = vector.load %arg6[%c0, %c0_2] : memref<1x384xf32, #tpu.memory_space<vmem>>, vector<1x384xf32>
      tpu.vector_store %arg6[%c0, %c0_2], %8 {strides = array<i32>} : memref<1x384xf32, #tpu.memory_space<vmem>>, vector<1x384xf32>,
    } else {
    }
    %3 = arith.index_cast %arg0 : i32 to index
    %4 = memref.load %arg3[%3] : memref<1xi32, #tpu.memory_space<smem>>
    %5 = arith.cmpi slt, %arg1, %4 : i32
    %6 = arith.extui %5 : i1 to i32
    %c0_i32_1 = arith.constant 0 : i32
    %7 = arith.cmpi ne, %6, %c0_i32_1 : i32
    scf.if %7 {
      %c0 = arith.constant 0 : index
      %c0_2 = arith.constant 0 : index
      %8 = vector.load %arg6[%c0, %c0_2] : memref<1x384xf32, #tpu.memory_space<vmem>>, vector<1x384xf32>
      %c0_3 = arith.constant 0 : index
      %c0_4 = arith.constant 0 : index
      %9 = vector.load %arg4[%c0_3, %c0_4] : memref<1x256xf32, #tpu.memory_space<vmem>>, vector<1x256xf32>
      %10 = arith.truncf %9 : vector<1x256xf32> to vector<1x256xbf16>
      %c0_5 = arith.constant 0 : index
      %c0_6 = arith.constant 0 : index
      %11 = vector.load %arg5[%c0_5, %c0_6] : memref<256x384xbf16, #tpu.memory_space<vmem>>, vector<256x384xbf16>
      %cst = arith.constant dense<0.000000e+00> : vector<1x384xf32>
      %12 = tpu.matmul %10, %11, %cst {dimension_numbers = #tpu.dot_dimension_numbers<[1], [0], [0], [1], [0, 0, 1, 1], [], []>} : vector<1x256xbf16>, vector<256x384xbf16>, vector<1x384xf32> -> vector<1x384xf32>
      %13 = arith.addf %8, %12 : vector<1x384xf32>
      %c0_7 = arith.constant 0 : index
      %c0_8 = arith.constant 0 : index
      %14 = vector.load %arg6[%c0_7, %c0_8] : memref<1x384xf32, #tpu.memory_space<vmem>>, vector<1x384xf32>
      tpu.vector_store %arg6[%c0_7, %c0_8], %13 {strides = array<i32>} : memref<1x384xf32, #tpu.memory_space<vmem>>, vector<1x384xf32>,
    } else {
    }
    return
  }
  func.func @transform_0(%arg0: i32, %arg1: i32, %arg2: memref<1xi32, #tpu.memory_space<smem>>, %arg3: memref<1xi32, #tpu.memory_space<smem>>) -> (i32, i32) {
    %c1_i32 = arith.constant 1 : i32
    %0 = arith.muli %arg0, %c1_i32 : i32
    %1 = arith.addi %0, %arg1 : i32
    %2 = arith.index_cast %1 : i32 to index
    %3 = memref.load %arg2[%2] : memref<1xi32, #tpu.memory_space<smem>>
    %c0_i32 = arith.constant 0 : i32
    %c0_i32_0 = arith.constant 0 : i32
    return %c0_i32, %3 : i32, i32
  }
  func.func @transform_1(%arg0: i32, %arg1: i32, %arg2: memref<1xi32, #tpu.memory_space<smem>>, %arg3: memref<1xi32, #tpu.memory_space<smem>>) -> (i32, i32) {
    %c1_i32 = arith.constant 1 : i32
    %0 = arith.muli %arg0, %c1_i32 : i32
    %1 = arith.addi %0, %arg1 : i32
    %2 = arith.index_cast %1 : i32 to index
    %3 = memref.load %arg2[%2] : memref<1xi32, #tpu.memory_space<smem>>
    %c0_i32 = arith.constant 0 : i32
    return %3, %arg0 : i32, i32
  }
  func.func @transform_2(%arg0: i32, %arg1: i32, %arg2: memref<1xi32, #tpu.memory_space<smem>>, %arg3: memref<1xi32, #tpu.memory_space<smem>>) -> (i32, i32) {
    %c0_i32 = arith.constant 0 : i32
    %c0_i32_0 = arith.constant 0 : i32
    return %c0_i32, %arg0 : i32, i32
  }
}

module attributes {stable_mosaic.version = 11 : i64} {
  func.func @_banded_gemv_kernel(%arg0: i32, %arg1: i32, %arg2: memref<1xi32, #tpu.memory_space<smem>>, %arg3: memref<1xi32, #tpu.memory_space<smem>>, %arg4: memref<1x384xf32, #tpu.memory_space<vmem>>, %arg5: memref<384x256xbf16, #tpu.memory_space<vmem>>, %arg6: memref<1x256xf32, #tpu.memory_space<vmem>>) attributes {dimension_semantics = [#tpu.dimension_semantics<parallel>, #tpu.dimension_semantics<arbitrary>], iteration_bounds = array<i64: 1, 1>, scalar_prefetch = 2 : i64, scratch_operands = 0 : i64, tpu.core_type = #tpu.core_type<tc>, window_params = [{transform_indices = @transform_0, window_bounds = array<i64: 1, 384>}, {transform_indices = @transform_1, window_bounds = array<i64: 384, 256>}, {transform_indices = @transform_2, window_bounds = array<i64: 1, 256>}]} {
    %c0_i32 = arith.constant 0 : i32
    %0 = arith.cmpi eq, %arg1, %c0_i32 : i32
    %1 = arith.extui %0 : i1 to i32
    %c0_i32_0 = arith.constant 0 : i32
    %2 = arith.cmpi ne, %1, %c0_i32_0 : i32
    scf.if %2 {
      %cst = arith.constant 0.000000e+00 : f32
      %8 = vector.broadcast %cst : f32 to vector<1x256xf32>
      %c0 = arith.constant 0 : index
      %c0_2 = arith.constant 0 : index
      %9 = vector.load %arg6[%c0, %c0_2] : memref<1x256xf32, #tpu.memory_space<vmem>>, vector<1x256xf32>
      tpu.vector_store %arg6[%c0, %c0_2], %8 {strides = array<i32>} : memref<1x256xf32, #tpu.memory_space<vmem>>, vector<1x256xf32>,
    } else {
    }
    %3 = arith.index_cast %arg0 : i32 to index
    %4 = memref.load %arg3[%3] : memref<1xi32, #tpu.memory_space<smem>>
    %5 = arith.cmpi slt, %arg1, %4 : i32
    %6 = arith.extui %5 : i1 to i32
    %c0_i32_1 = arith.constant 0 : i32
    %7 = arith.cmpi ne, %6, %c0_i32_1 : i32
    scf.if %7 {
      %c0 = arith.constant 0 : index
      %c0_2 = arith.constant 0 : index
      %8 = vector.load %arg6[%c0, %c0_2] : memref<1x256xf32, #tpu.memory_space<vmem>>, vector<1x256xf32>
      %c0_3 = arith.constant 0 : index
      %c0_4 = arith.constant 0 : index
      %9 = vector.load %arg4[%c0_3, %c0_4] : memref<1x384xf32, #tpu.memory_space<vmem>>, vector<1x384xf32>
      %10 = arith.truncf %9 : vector<1x384xf32> to vector<1x384xbf16>
      %c0_5 = arith.constant 0 : index
      %c0_6 = arith.constant 0 : index
      %11 = vector.load %arg5[%c0_5, %c0_6] : memref<384x256xbf16, #tpu.memory_space<vmem>>, vector<384x256xbf16>
      %cst = arith.constant dense<0.000000e+00> : vector<1x256xf32>
      %12 = tpu.matmul %10, %11, %cst {dimension_numbers = #tpu.dot_dimension_numbers<[1], [0], [0], [1], [0, 0, 1, 1], [], []>} : vector<1x384xbf16>, vector<384x256xbf16>, vector<1x256xf32> -> vector<1x256xf32>
      %13 = arith.addf %8, %12 : vector<1x256xf32>
      %c0_7 = arith.constant 0 : index
      %c0_8 = arith.constant 0 : index
      %14 = vector.load %arg6[%c0_7, %c0_8] : memref<1x256xf32, #tpu.memory_space<vmem>>, vector<1x256xf32>
      tpu.vector_store %arg6[%c0_7, %c0_8], %13 {strides = array<i32>} : memref<1x256xf32, #tpu.memory_space<vmem>>, vector<1x256xf32>,
    } else {
    }
    return
  }
  func.func @transform_0(%arg0: i32, %arg1: i32, %arg2: memref<1xi32, #tpu.memory_space<smem>>, %arg3: memref<1xi32, #tpu.memory_space<smem>>) -> (i32, i32) {
    %c1_i32 = arith.constant 1 : i32
    %0 = arith.muli %arg0, %c1_i32 : i32
    %1 = arith.addi %0, %arg1 : i32
    %2 = arith.index_cast %1 : i32 to index
    %3 = memref.load %arg2[%2] : memref<1xi32, #tpu.memory_space<smem>>
    %c0_i32 = arith.constant 0 : i32
    %c0_i32_0 = arith.constant 0 : i32
    return %c0_i32, %3 : i32, i32
  }
  func.func @transform_1(%arg0: i32, %arg1: i32, %arg2: memref<1xi32, #tpu.memory_space<smem>>, %arg3: memref<1xi32, #tpu.memory_space<smem>>) -> (i32, i32) {
    %c1_i32 = arith.constant 1 : i32
    %0 = arith.muli %arg0, %c1_i32 : i32
    %1 = arith.addi %0, %arg1 : i32
    %2 = arith.index_cast %1 : i32 to index
    %3 = memref.load %arg2[%2] : memref<1xi32, #tpu.memory_space<smem>>
    %c0_i32 = arith.constant 0 : i32
    return %3, %arg0 : i32, i32
  }
  func.func @transform_2(%arg0: i32, %arg1: i32, %arg2: memref<1xi32, #tpu.memory_space<smem>>, %arg3: memref<1xi32, #tpu.memory_space<smem>>) -> (i32, i32) {
    %c0_i32 = arith.constant 0 : i32
    %c0_i32_0 = arith.constant 0 : i32
    return %c0_i32, %arg0 : i32, i32
  }
}

</mosaic_0001>

<llo_original>
// kernel: squeeze.3
$region0: #{squeeze.3}
  %s0 = inlined_call_operand.vmem [shape: f32[256], index: 0, kind: input, shape index: {}]
  %s1 = inlined_call_operand.hbm [shape: f32[2,8,16], index: 1, kind: output, shape index: {}]
  $region1: #{squeeze.3} parent=0
    #allocation0 [shape = 'u8[8192]{0}', space=vmem, size = 0x2000, scoped, tag = 'operand span for operand 1']
    #allocation1 [shape = 's32[1]{0}', space=sflag, size = 0x4, scoped, tag = 'scoped memory for squeeze.3']
    #allocation2 [shape = 'u8[4096]{0}', space=vmem, size = 0x1000, scoped, tag = 'scoped mem for input reshape']
    %2 = vsyncpa [#allocation1], 0
    %s4 = sshllo.u32 0, 2
    %v5 = vld [vmem:[%s0] sm:%s4]
    %6 = vst [vmem:[#allocation2] sm:%s4] %v5
    %v7 = vld [vmem:[#allocation2] sm:$0x3]
    %vm8 = vcmask 130048
    %9 = vst.msk [vmem:[#allocation0] ss:$8 sm:$0x3] %vm8, %v7
    %v10 = vld [vmem:[#allocation2] sm:$0x3]
    %11 = vrot.lane.b32.xlu0 %v10, 112
    %v12 = vpop.permute.xlu0 %11
    %vm13 = vcmask 130048
    %s14 = scalar_lea.vmem [#allocation0], 1
    %15 = vst.msk [vmem:[%s14] ss:$8 sm:$0x3] %vm13, %v12
    %v16 = vld [vmem:[#allocation2] sm:$0x3]
    %17 = vrot.lane.b32.xlu0 %v16, 96
    %v18 = vpop.permute.xlu0 %17
    %vm19 = vcmask 130048
    %s20 = scalar_lea.vmem [#allocation0], 2
    %21 = vst.msk [vmem:[%s20] ss:$8 sm:$0x3] %vm19, %v18
    %v22 = vld [vmem:[#allocation2] sm:$0x3]
    %23 = vrot.lane.b32.xlu0 %v22, 80
    %v24 = vpop.permute.xlu0 %23
    %vm25 = vcmask 130048
    %s26 = scalar_lea.vmem [#allocation0], 3
    %27 = vst.msk [vmem:[%s26] ss:$8 sm:$0x3] %vm25, %v24
    %v28 = vld [vmem:[#allocation2] sm:$0x3]
    %29 = vrot.lane.b32.xlu0 %v28, 64
    %v30 = vpop.permute.xlu0 %29
    %vm31 = vcmask 130048
    %s32 = scalar_lea.vmem [#allocation0], 4
    %33 = vst.msk [vmem:[%s32] ss:$8 sm:$0x3] %vm31, %v30
    %v34 = vld [vmem:[#allocation2] sm:$0x3]
    %35 = vrot.lane.b32.xlu0 %v34, 48
    %v36 = vpop.permute.xlu0 %35
    %vm37 = vcmask 130048
    %s38 = scalar_lea.vmem [#allocation0], 5
    %39 = vst.msk [vmem:[%s38] ss:$8 sm:$0x3] %vm37, %v36
    %v40 = vld [vmem:[#allocation2] sm:$0x3]
    %41 = vrot.lane.b32.xlu0 %v40, 32
    %v42 = vpop.permute.xlu0 %41
    %vm43 = vcmask 130048
    %s44 = scalar_lea.vmem [#allocation0], 6
    %45 = vst.msk [vmem:[%s44] ss:$8 sm:$0x3] %vm43, %v42
    %v46 = vld [vmem:[#allocation2] sm:$0x3]
    %47 = vrot.lane.b32.xlu0 %v46, 16
    %v48 = vpop.permute.xlu0 %47
    %vm49 = vcmask 130048
    %s50 = scalar_lea.vmem [#allocation0], 7
    %51 = vst.msk [vmem:[%s50] ss:$8 sm:$0x3] %vm49, %v48
    %s53 = ssub.s32 256, 256
    %54 = vsyncadd [#allocation1], %s53
    %s56 = sshll.u32 [#allocation0], 4
    %s57 = int_to_ptr.vmem [resolvable:$true] %s56
    %59 = dma.vmem_to_hbm [thread:$0]  %s57, 256, %s1, [#allocation1]
    %60 = dma.done [#allocation1], 256
    %61 = vsyncpa [#allocation1], 1

// kernel: forward.2
$region0: #{forward.2}
  #allocation0 [shape = 'u32[]', space=smem, size = 0x4, offset = 0x4, fixed_abs, tag = 'smem constant byte address 0x4 - core index']
  #allocation1 [shape = 'u32[144,128]{1,0:T(1,128)}', space=vmem, size = 0x12000, scoped, tag = 'internal scratch']
  #allocation2 [shape = 's32[1]{0}', space=sflag, size = 0x4, scoped, tag = 'scoped memory for forward.2']
  #allocation3 [shape = 's32[1]{0:T(128)S(6)}', space=smem, size = 0x200, scoped, tag = 'prefetched SMEM operand 0']
  #allocation4 [shape = 's32[1]{0:T(128)S(6)}', space=smem, size = 0x200, scoped, tag = 'prefetched SMEM operand 1']
  %s0 = inlined_call_operand.<no memory space> [shape: s32[1], index: 0, kind: input, shape index: {}]
  %s1 = inlined_call_operand.<no memory space> [shape: s32[1], index: 1, kind: input, shape index: {}]
  %s2 = inlined_call_operand.hbm [shape: f32[1,256], index: 2, kind: input, shape index: {}]
  %s3 = inlined_call_operand.hbm [shape: bf16[256,384], index: 3, kind: input, shape index: {}]
  %s4 = inlined_call_operand.hbm [shape: f32[1,384], index: 4, kind: output, shape index: {}]
  %s5 = sld [smem:[#allocation0]]
  $region34: #{forward.2} parent=0
    _
  %s7 = ssub.s32 1, %s5
  %s8 = scalar_select 0, %s7, %s5
  %9 = sst [smem:[#allocation3]] %s0
  %10 = sst [smem:[#allocation4]] %s1
  $region1: #{forward.2} parent=0
    #allocation5 [shape = 'u8[1024]{0}', space=vmem, size = 0x400, scoped, tag = 'input window, operand 2, single buffered']
    #allocation6 [shape = 's32[1]{0}', space=sflag, size = 0x4, scoped, tag = 'scoped memory for forward.2']
    #allocation7 [shape = 's32[1]{0}', space=sflag, size = 0x4, scoped, tag = 'scoped memory for forward.2']
    #allocation8 [shape = 'u8[196608]{0}', space=vmem, size = 0x30000, scoped, tag = 'input window, operand 3, single buffered']
    #allocation9 [shape = 's32[1]{0}', space=sflag, size = 0x4, scoped, tag = 'scoped memory for forward.2']
    #allocation10 [shape = 'u8[1536]{0}', space=vmem, size = 0x800, scoped, tag = 'output window, operand 0, single buffered']
    %11 = vsyncpa [#allocation6], 0
    %12 = vsyncpa [#allocation9], 0
    %13 = vsyncpa [#allocation7], 0
    // Predicated region
    $region2: #{forward.2} parent=1 // pred_check
      _
    $region3: #{forward.2} parent=1 // pred_check_branch
      %15 = sbr.rel (0) target = $region5
    $region4: #{forward.2} parent=1 // pred_region
      %s16 = sadd.s32 0, 0
      %s17 = sld [smem:[#allocation3 + %s16]]
      %s18 = smul.u32 2, %s17
      %s20 = ssub.s32 32, 32
      %21 = vsyncadd [#allocation6], %s20
      %s22 = smul.addr %s18, 16
      %s23 = scalar_lea.hbm %s2, %s22
      %s25 = sshll.u32 [#allocation5], 4
      %s26 = int_to_ptr.vmem [resolvable:$true] %s25
      %28 = dma.hbm_to_vmem [thread:$0]  %s23, 32, %s26, [#allocation6]
    $region5: #{forward.2} parent=1 // pred_fallthru
      _
    // Predicated region
    $region6: #{forward.2} parent=1 // pred_check
      _
    $region7: #{forward.2} parent=1 // pred_check_branch
      %30 = sbr.rel (0) target = $region9
    $region8: #{forward.2} parent=1 // pred_region
      %s31 = sadd.s32 0, 0
      %s32 = sld [smem:[#allocation3 + %s31]]
      %s33 = smul.u32 32, %s32
      %s35 = ssub.s32 6144, 6144
      %36 = vsyncadd [#allocation9], %s35
      %s37 = smul.addr %s33, 3
      %s38 = smul.addr %s37, 64
      %s39 = scalar_lea.hbm %s3, %s38
      %s40 = sshll.u32 [#allocation8], 4
      %s41 = int_to_ptr.vmem [resolvable:$true] %s40
      %46 = dma.hbm_to_vmem [thread:$0]  %s39, 6144, %s41, [#allocation9], 192, 192, 12
    $region9: #{forward.2} parent=1 // pred_fallthru
      _
    // Predicated region
    $region10: #{forward.2} parent=1 // pred_check
      _
    $region11: #{forward.2} parent=1 // pred_check_branch
      %48 = sbr.rel (0) target = $region13
    $region12: #{forward.2} parent=1 // pred_region
      %49 = dma.done [#allocation6], 32
    $region13: #{forward.2} parent=1 // pred_fallthru
      _
    // Predicated region
    $region14: #{forward.2} parent=1 // pred_check
      _
    $region15: #{forward.2} parent=1 // pred_check_branch
      %51 = sbr.rel (0) target = $region17
    $region16: #{forward.2} parent=1 // pred_region
      %52 = dma.done [#allocation9], 6144
    $region17: #{forward.2} parent=1 // pred_fallthru
      _
    %s53 = sadd.s32 0, 0
    %s54 = sld [smem:[#allocation3 + %s53]]
    %s55 = smul.u32 2, %s54
    %s56 = sadd.s32 0, 0
    %s57 = sld [smem:[#allocation3 + %s56]]
    %s58 = smul.u32 32, %s57
    %p60 = scmp.eq.s32.totalorder 0, 0
    // Predicated region
    $region18: #{forward.2} parent=1 // pred_check
      %p61 = pneg %p60
    $region19: #{forward.2} parent=1 // pred_check_branch
      %63 = sbr.rel (%p61) target = $region21
    $region20: #{forward.2} parent=1 // pred_region
      %v64 = vlaneseq
      %vm65 = vcmp.ge.s32.totalorder %v64, 0
      %vm66 = vcmp.lt.s32.totalorder %v64, 384
      %vm67 = vmand %vm65, %vm66
      %68 = vst.msk [vmem:[#allocation10] sm:$0x7] %vm67, 0.0
    $region21: #{forward.2} parent=1 // pred_fallthru
      _
    %s69 = sld [smem:[#allocation4]]
    %p70 = scmp.lt.s32.totalorder 0, %s69
    // Predicated region
    $region22: #{forward.2} parent=1 // pred_check
      %p71 = pneg %p70
    $region23: #{forward.2} parent=1 // pred_check_branch
      %73 = sbr.rel (%p71) target = $region25
    $region24: #{forward.2} parent=1 // pred_region
      %v74 = vld [vmem:[#allocation10] sm:$0x7]
      %v75 = vld [vmem:[#allocation5] sm:$0x3]
      %v77 = vlaneseq
      %v78 = vshrl.u32 %v77, 7
      %v79 = vsub.s32 0, %v78
      %v80 = vrot.slane %v75, %v79
      %v81 = vlaneseq
      %v82 = vshrl.u32 %v81, 7
      %v83 = vsub.s32 1, %v82
      %v84 = vrot.slane %v75, %v83
      %v87 = vpack.c.bf16 %v80, %v80
      %v88 = vpack.c.bf16 %v84, %v84
      %v89 = vld [vmem:[#allocation8] sm:$0xff]
      %v90 = vld [vmem:[#allocation8 + $0x8] sm:$0xf]
      %v91 = vld [vmem:[#allocation8 + $0xc] sm:$0xff]
      %v92 = vld [vmem:[#allocation8 + $0x14] sm:$0xf]
      %v93 = vld [vmem:[#allocation8 + $0x18] sm:$0xff]
      %v94 = vld [vmem:[#allocation8 + $0x20] sm:$0xf]
      %v95 = vld [vmem:[#allocation8 + $0x24] sm:$0xff]
      %v96 = vld [vmem:[#allocation8 + $0x2c] sm:$0xf]
      %v97 = vld [vmem:[#allocation8 + $0x30] sm:$0xff]
      %v98 = vld [vmem:[#allocation8 + $0x38] sm:$0xf]
      %v99 = vld [vmem:[#allocation8 + $0x3c] sm:$0xff]
      %v100 = vld [vmem:[#allocation8 + $0x44] sm:$0xf]
      %v101 = vld [vmem:[#allocation8 + $0x48] sm:$0xff]
      %v102 = vld [vmem:[#allocation8 + $0x50] sm:$0xf]
      %v103 = vld [vmem:[#allocation8 + $0x54] sm:$0xff]
      %v104 = vld [vmem:[#allocation8 + $0x5c] sm:$0xf]
      %v105 = vld [vmem:[#allocation8 + $0x60] sm:$0xff]
      %v106 = vld [vmem:[#allocation8 + $0x68] sm:$0xf]
      %v107 = vld [vmem:[#allocation8 + $0x6c] sm:$0xff]
      %v108 = vld [vmem:[#allocation8 + $0x74] sm:$0xf]
      %v109 = vld [vmem:[#allocation8 + $0x78] sm:$0xff]
      %v110 = vld [vmem:[#allocation8 + $0x80] sm:$0xf]
      %v111 = vld [vmem:[#allocation8 + $0x84] sm:$0xff]
      %v112 = vld [vmem:[#allocation8 + $0x8c] sm:$0xf]
      %v113 = vld [vmem:[#allocation8 + $0x90] sm:$0xff]
      %v114 = vld [vmem:[#allocation8 + $0x98] sm:$0xf]
      %v115 = vld [vmem:[#allocation8 + $0x9c] sm:$0xff]
      %v116 = vld [vmem:[#allocation8 + $0xa4] sm:$0xf]
      %v117 = vld [vmem:[#allocation8 + $0xa8] sm:$0xff]
      %v118 = vld [vmem:[#allocation8 + $0xb0] sm:$0xf]
      %v119 = vld [vmem:[#allocation8 + $0xb4] sm:$0xff]
      %v120 = vld [vmem:[#allocation8 + $0xbc] sm:$0xf]
      %v121 = vld [vmem:[#allocation8 + $0xc0] sm:$0xff]
      %v122 = vld [vmem:[#allocation8 + $0xc8] sm:$0xf]
      %v123 = vld [vmem:[#allocation8 + $0xcc] sm:$0xff]
      %v124 = vld [vmem:[#allocation8 + $0xd4] sm:$0xf]
      %v125 = vld [vmem:[#allocation8 + $0xd8] sm:$0xff]
      %v126 = vld [vmem:[#allocation8 + $0xe0] sm:$0xf]
      %v127 = vld [vmem:[#allocation8 + $0xe4] sm:$0xff]
      %v128 = vld [vmem:[#allocation8 + $0xec] sm:$0xf]
      %v129 = vld [vmem:[#allocation8 + $0xf0] sm:$0xff]
      %v130 = vld [vmem:[#allocation8 + $0xf8] sm:$0xf]
      %v131 = vld [vmem:[#allocation8 + $0xfc] sm:$0xff]
      %v132 = vld [vmem:[#allocation8 + $0x104] sm:$0xf]
      %v133 = vld [vmem:[#allocation8 + $0x108] sm:$0xff]
      %v134 = vld [vmem:[#allocation8 + $0x110] sm:$0xf]
      %v135 = vld [vmem:[#allocation8 + $0x114] sm:$0xff]
      %v136 = vld [vmem:[#allocation8 + $0x11c] sm:$0xf]
      %v137 = vld [vmem:[#allocation8 + $0x120] sm:$0xff]
      %v138 = vld [vmem:[#allocation8 + $0x128] sm:$0xf]
      %v139 = vld [vmem:[#allocation8 + $0x12c] sm:$0xff]
      %v140 = vld [vmem:[#allocation8 + $0x134] sm:$0xf]
      %v141 = vld [vmem:[#allocation8 + $0x138] sm:$0xff]
      %v142 = vld [vmem:[#allocation8 + $0x140] sm:$0xf]
      %v143 = vld [vmem:[#allocation8 + $0x144] sm:$0xff]
      %v144 = vld [vmem:[#allocation8 + $0x14c] sm:$0xf]
      %v145 = vld [vmem:[#allocation8 + $0x150] sm:$0xff]
      %v146 = vld [vmem:[#allocation8 + $0x158] sm:$0xf]
      %v147 = vld [vmem:[#allocation8 + $0x15c] sm:$0xff]
      %v148 = vld [vmem:[#allocation8 + $0x164] sm:$0xf]
      %v149 = vld [vmem:[#allocation8 + $0x168] sm:$0xff]
      %v150 = vld [vmem:[#allocation8 + $0x170] sm:$0xf]
      %v151 = vld [vmem:[#allocation8 + $0x174] sm:$0xff]
      %v152 = vld [vmem:[#allocation8 + $0x17c] sm:$0xf]
      %v217 = vunpack.c.l.b16 %v89
      %v218 = vunpack.c.h.b16 %v89
      %v219 = vunpack.c.l.b16 %v90
      %v220 = vunpack.c.l.b16 %v91
      %v221 = vunpack.c.h.b16 %v91
      %v222 = vunpack.c.l.b16 %v92
      %v223 = vunpack.c.l.b16 %v93
      %v224 = vunpack.c.h.b16 %v93
      %v225 = vunpack.c.l.b16 %v94
      %v226 = vunpack.c.l.b16 %v95
      %v227 = vunpack.c.h.b16 %v95
      %v228 = vunpack.c.l.b16 %v96
      %v229 = vunpack.c.l.b16 %v97
      %v230 = vunpack.c.h.b16 %v97
      %v231 = vunpack.c.l.b16 %v98
      %v232 = vunpack.c.l.b16 %v99
      %v233 = vunpack.c.h.b16 %v99
      %v234 = vunpack.c.l.b16 %v100
      %v235 = vunpack.c.l.b16 %v101
      %v236 = vunpack.c.h.b16 %v101
      %v237 = vunpack.c.l.b16 %v102
      %v238 = vunpack.c.l.b16 %v103
      %v239 = vunpack.c.h.b16 %v103
      %v240 = vunpack.c.l.b16 %v104
      %v241 = vunpack.c.l.b16 %v105
      %v242 = vunpack.c.h.b16 %v105
      %v243 = vunpack.c.l.b16 %v106
      %v244 = vunpack.c.l.b16 %v107
      %v245 = vunpack.c.h.b16 %v107
      %v246 = vunpack.c.l.b16 %v108
      %v247 = vunpack.c.l.b16 %v109
      %v248 = vunpack.c.h.b16 %v109
      %v249 = vunpack.c.l.b16 %v110
      %v250 = vunpack.c.l.b16 %v111
      %v251 = vunpack.c.h.b16 %v111
      %v252 = vunpack.c.l.b16 %v112
      %v253 = vunpack.c.l.b16 %v113
      %v254 = vunpack.c.h.b16 %v113
      %v255 = vunpack.c.l.b16 %v114
      %v256 = vunpack.c.l.b16 %v115
      %v257 = vunpack.c.h.b16 %v115
      %v258 = vunpack.c.l.b16 %v116
      %v259 = vunpack.c.l.b16 %v117
      %v260 = vunpack.c.h.b16 %v117
      %v261 = vunpack.c.l.b16 %v118
      %v262 = vunpack.c.l.b16 %v119
      %v263 = vunpack.c.h.b16 %v119
      %v264 = vunpack.c.l.b16 %v120
      %v265 = vunpack.c.l.b16 %v121
      %v266 = vunpack.c.h.b16 %v121
      %v267 = vunpack.c.l.b16 %v122
      %v268 = vunpack.c.l.b16 %v123
      %v269 = vunpack.c.h.b16 %v123
      %v270 = vunpack.c.l.b16 %v124
      %v271 = vunpack.c.l.b16 %v125
      %v272 = vunpack.c.h.b16 %v125
      %v273 = vunpack.c.l.b16 %v126
      %v274 = vunpack.c.l.b16 %v127
      %v275 = vunpack.c.h.b16 %v127
      %v276 = vunpack.c.l.b16 %v128
      %v277 = vunpack.c.l.b16 %v129
      %v278 = vunpack.c.h.b16 %v129
      %v279 = vunpack.c.l.b16 %v130
      %v280 = vunpack.c.l.b16 %v131
      %v281 = vunpack.c.h.b16 %v131
      %v282 = vunpack.c.l.b16 %v132
      %v283 = vunpack.c.l.b16 %v133
      %v284 = vunpack.c.h.b16 %v133
      %v285 = vunpack.c.l.b16 %v134
      %v286 = vunpack.c.l.b16 %v135
      %v287 = vunpack.c.h.b16 %v135
      %v288 = vunpack.c.l.b16 %v136
      %v289 = vunpack.c.l.b16 %v137
      %v290 = vunpack.c.h.b16 %v137
      %v291 = vunpack.c.l.b16 %v138
      %v292 = vunpack.c.l.b16 %v139
      %v293 = vunpack.c.h.b16 %v139
      %v294 = vunpack.c.l.b16 %v140
      %v295 = vunpack.c.l.b16 %v141
      %v296 = vunpack.c.h.b16 %v141
      %v297 = vunpack.c.l.b16 %v142
      %v298 = vunpack.c.l.b16 %v143
      %v299 = vunpack.c.h.b16 %v143
      %v300 = vunpack.c.l.b16 %v144
      %v301 = vunpack.c.l.b16 %v145
      %v302 = vunpack.c.h.b16 %v145
      %v303 = vunpack.c.l.b16 %v146
      %v304 = vunpack.c.l.b16 %v147
      %v305 = vunpack.c.h.b16 %v147
      %v306 = vunpack.c.l.b16 %v148
      %v307 = vunpack.c.l.b16 %v149
      %v308 = vunpack.c.h.b16 %v149
      %v309 = vunpack.c.l.b16 %v150
      %v310 = vunpack.c.l.b16 %v151
      %v311 = vunpack.c.h.b16 %v151
      %v312 = vunpack.c.l.b16 %v152
      %v313 = vpack.c.b16 %v220, %v217
      %v314 = vpack.c.b16 %v221, %v218
      %v315 = vpack.c.b16 %v222, %v219
      %v316 = vpack.c.b16 %v226, %v223
      %v317 = vpack.c.b16 %v227, %v224
      %v318 = vpack.c.b16 %v228, %v225
      %v319 = vpack.c.b16 %v232, %v229
      %v320 = vpack.c.b16 %v233, %v230
      %v321 = vpack.c.b16 %v234, %v231
      %v322 = vpack.c.b16 %v238, %v235
      %v323 = vpack.c.b16 %v239, %v236
      %v324 = vpack.c.b16 %v240, %v237
      %v325 = vpack.c.b16 %v244, %v241
      %v326 = vpack.c.b16 %v245, %v242
      %v327 = vpack.c.b16 %v246, %v243
      %v328 = vpack.c.b16 %v250, %v247
      %v329 = vpack.c.b16 %v251, %v248
      %v330 = vpack.c.b16 %v252, %v249
      %v331 = vpack.c.b16 %v256, %v253
      %v332 = vpack.c.b16 %v257, %v254
      %v333 = vpack.c.b16 %v258, %v255
      %v334 = vpack.c.b16 %v262, %v259
      %v335 = vpack.c.b16 %v263, %v260
      %v336 = vpack.c.b16 %v264, %v261
      %v337 = vpack.c.b16 %v268, %v265
      %v338 = vpack.c.b16 %v269, %v266
      %v339 = vpack.c.b16 %v270, %v267
      %v340 = vpack.c.b16 %v274, %v271
      %v341 = vpack.c.b16 %v275, %v272
      %v342 = vpack.c.b16 %v276, %v273
      %v343 = vpack.c.b16 %v280, %v277
      %v344 = vpack.c.b16 %v281, %v278
      %v345 = vpack.c.b16 %v282, %v279
      %v346 = vpack.c.b16 %v286, %v283
      %v347 = vpack.c.b16 %v287, %v284
      %v348 = vpack.c.b16 %v288, %v285
      %v349 = vpack.c.b16 %v292, %v289
      %v350 = vpack.c.b16 %v293, %v290
      %v351 = vpack.c.b16 %v294, %v291
      %v352 = vpack.c.b16 %v298, %v295
      %v353 = vpack.c.b16 %v299, %v296
      %v354 = vpack.c.b16 %v300, %v297
      %v355 = vpack.c.b16 %v304, %v301
      %v356 = vpack.c.b16 %v305, %v302
      %v357 = vpack.c.b16 %v306, %v303
      %v358 = vpack.c.b16 %v310, %v307
      %v359 = vpack.c.b16 %v311, %v308
      %v360 = vpack.c.b16 %v312, %v309
      %409 = vmatprep.subr.bf16.mxu0 %v314
      %410 = vmatpush1.bf16.msra.mxu0 %v313
      %411 = vmatprep.subr.bf16.mxu0 %v317
      %412 = vmatpush1.bf16.msra.mxu0 %v316
      %413 = vmatprep.subr.bf16.mxu0 %v320
      %414 = vmatpush1.bf16.msra.mxu0 %v319
      %415 = vmatprep.subr.bf16.mxu0 %v323
      %416 = vmatpush1.bf16.msra.mxu0 %v322
      %417 = vmatprep.subr.bf16.mxu0 %v326
      %418 = vmatpush1.bf16.msra.mxu0 %v325
      %419 = vmatprep.subr.bf16.mxu0 %v329
      %420 = vmatpush1.bf16.msra.mxu0 %v328
      %421 = vmatprep.subr.bf16.mxu0 %v332
      %422 = vmatpush1.bf16.msra.mxu0 %v331
      %423 = vmatprep.subr.bf16.mxu0 %v335
      %424 = vmatpush1.bf16.msra.mxu0 %v334
      %425 = vmatprep.subr.bf16.mxu0 %v338
      %426 = vmatpush1.bf16.msra.mxu0 %v337
      %427 = vmatprep.subr.bf16.mxu0 %v341
      %428 = vmatpush1.bf16.msra.mxu0 %v340
      %429 = vmatprep.subr.bf16.mxu0 %v344
      %430 = vmatpush1.bf16.msra.mxu0 %v343
      %431 = vmatprep.subr.bf16.mxu0 %v347
      %432 = vmatpush1.bf16.msra.mxu0 %v346
      %433 = vmatprep.subr.bf16.mxu0 %v350
      %434 = vmatpush1.bf16.msra.mxu0 %v349
      %435 = vmatprep.subr.bf16.mxu0 %v353
      %436 = vmatpush1.bf16.msra.mxu0 %v352
      %437 = vmatprep.subr.bf16.mxu0 %v356
      %438 = vmatpush1.bf16.msra.mxu0 %v355
      %439 = vmatprep.subr.bf16.mxu0 %v359
      %440 = vmatpush1.bf16.msra.mxu0 %v358
      %441 = vmatprep.mubr.bf16.mxu0 %v88
      %442 = vmatmul.mubr.bf16.gmra.mrb[0].mxu0 %v87
      %v443 = vpop.f32.mrb[0].mxu0
      %v444 = vadd.f32 0.0, %v443
      %v445 = vpop.f32.mrb[0].mxu0
      %v446 = vadd.f32 0.0, %v445
      %v447 = vpop.f32.mrb[0].mxu0
      %v448 = vpop.f32.mrb[0].mxu0
      %449 = vdwg.mxu0
      %450 = vmatprep.subr.bf16.mxu0 0
      %451 = vmatpush1.bf16.msra.mxu0 %v315
      %452 = vmatprep.subr.bf16.mxu0 0
      %453 = vmatpush1.bf16.msra.mxu0 %v318
      %454 = vmatprep.subr.bf16.mxu0 0
      %455 = vmatpush1.bf16.msra.mxu0 %v321
      %456 = vmatprep.subr.bf16.mxu0 0
      %457 = vmatpush1.bf16.msra.mxu0 %v324
      %458 = vmatprep.subr.bf16.mxu0 0
      %459 = vmatpush1.bf16.msra.mxu0 %v327
      %460 = vmatprep.subr.bf16.mxu0 0
      %461 = vmatpush1.bf16.msra.mxu0 %v330
      %462 = vmatprep.subr.bf16.mxu0 0
      %463 = vmatpush1.bf16.msra.mxu0 %v333
      %464 = vmatprep.subr.bf16.mxu0 0
      %465 = vmatpush1.bf16.msra.mxu0 %v336
      %466 = vmatprep.subr.bf16.mxu0 0
      %467 = vmatpush1.bf16.msra.mxu0 %v339
      %468 = vmatprep.subr.bf16.mxu0 0
      %469 = vmatpush1.bf16.msra.mxu0 %v342
      %470 = vmatprep.subr.bf16.mxu0 0
      %471 = vmatpush1.bf16.msra.mxu0 %v345
      %472 = vmatprep.subr.bf16.mxu0 0
      %473 = vmatpush1.bf16.msra.mxu0 %v348
      %474 = vmatprep.subr.bf16.mxu0 0
      %475 = vmatpush1.bf16.msra.mxu0 %v351
      %476 = vmatprep.subr.bf16.mxu0 0
      %477 = vmatpush1.bf16.msra.mxu0 %v354
      %478 = vmatprep.subr.bf16.mxu0 0
      %479 = vmatpush1.bf16.msra.mxu0 %v357
      %480 = vmatprep.subr.bf16.mxu0 0
      %481 = vmatpush1.bf16.msra.mxu0 %v360
      %482 = vmatprep.mubr.bf16.mxu0 %v88
      %483 = vmatmul.mubr.bf16.gmra.mrb[0].mxu0 %v87
      %v484 = vpop.f32.mrb[0].mxu0
      %v485 = vadd.f32 0.0, %v484
      %v486 = vpop.f32.mrb[0].mxu0
      %v487 = vpop.f32.mrb[0].mxu0
      %v488 = vpop.f32.mrb[0].mxu0
      %489 = vdwg.mxu0
      %v493 = vcombine.low %v444, %v446
      %v495 = vunpack.c.l.s4 1966171168
      %v496 = vunpack.c.0.s8 %v495
      %v497 = vlaneseq
      %v498 = vshrl.u32 %v497, 7
      %v499 = vsub.s32 %v496, %v498
      %v500 = vrot.slane %v493, %v499
      %v502 = vunpack.c.l.s4 1966171168
      %v503 = vunpack.c.0.s8 %v502
      %v504 = vlaneseq
      %v505 = vshrl.u32 %v504, 7
      %v506 = vsub.s32 %v503, %v505
      %v507 = vrot.slane %v485, %v506
      %v508 = vcombine.low %v500, %v507
      %v510 = vunpack.c.l.s4 1966171168
      %v511 = vunpack.c.0.s8 %v510
      %v512 = vlaneseq
      %v513 = vshrl.u32 %v512, 7
      %v514 = vsub.s32 %v511, %v513
      %v515 = vrot.slane %v508, %v514
      %v517 = vadd.f32 %v74, %v515
      %v518 = vlaneseq
      %vm519 = vcmp.ge.s32.totalorder %v518, 0
      %vm520 = vcmp.lt.s32.totalorder %v518, 384
      %vm521 = vmand %vm519, %vm520
      %522 = vst.msk [vmem:[#allocation10] sm:$0x7] %vm521, %v517
    $region25: #{forward.2} parent=1 // pred_fallthru
      _
    // Predicated region
    $region26: #{forward.2} parent=1 // pred_check
      _
    $region27: #{forward.2} parent=1 // pred_check_branch
      %524 = sbr.rel (0) target = $region29
    $region28: #{forward.2} parent=1 // pred_region
      %s526 = ssub.s32 48, 48
      %527 = vsyncadd [#allocation7], %s526
      %s529 = sshll.u32 [#allocation10], 4
      %s530 = int_to_ptr.vmem [resolvable:$true] %s529
      %532 = dma.vmem_to_hbm [thread:$0]  %s530, 48, %s4, [#allocation7]
    $region29: #{forward.2} parent=1 // pred_fallthru
      _
    // Predicated region
    $region30: #{forward.2} parent=1 // pred_check
      _
    $region31: #{forward.2} parent=1 // pred_check_branch
      %534 = sbr.rel (0) target = $region33
    $region32: #{forward.2} parent=1 // pred_region
      %535 = dma.done [#allocation7], 48
    $region33: #{forward.2} parent=1 // pred_fallthru
      _
    %536 = vsyncpa [#allocation6], 1
    %537 = vsyncpa [#allocation9], 1
    %538 = vsyncpa [#allocation7], 1

// kernel: forward.3
$region0: #{forward.3}
  #allocation0 [shape = 'u32[]', space=smem, size = 0x4, offset = 0x4, fixed_abs, tag = 'smem constant byte address 0x4 - core index']
  #allocation1 [shape = 'u32[144,128]{1,0:T(1,128)}', space=vmem, size = 0x12000, scoped, tag = 'internal scratch']
  #allocation2 [shape = 's32[1]{0}', space=sflag, size = 0x4, scoped, tag = 'scoped memory for forward.3']
  #allocation3 [shape = 's32[1]{0:T(128)S(6)}', space=smem, size = 0x200, scoped, tag = 'prefetched SMEM operand 0']
  #allocation4 [shape = 's32[1]{0:T(128)S(6)}', space=smem, size = 0x200, scoped, tag = 'prefetched SMEM operand 1']
  %s0 = inlined_call_operand.<no memory space> [shape: s32[1], index: 0, kind: input, shape index: {}]
  %s1 = inlined_call_operand.<no memory space> [shape: s32[1], index: 1, kind: input, shape index: {}]
  %s2 = inlined_call_operand.hbm [shape: f32[1,384], index: 2, kind: input, shape index: {}]
  %s3 = inlined_call_operand.hbm [shape: bf16[384,256], index: 3, kind: input, shape index: {}]
  %s4 = inlined_call_operand.hbm [shape: f32[1,256], index: 4, kind: output, shape index: {}]
  %s5 = sld [smem:[#allocation0]]
  $region34: #{forward.3} parent=0
    _
  %s7 = ssub.s32 1, %s5
  %s8 = scalar_select 0, %s7, %s5
  %9 = sst [smem:[#allocation3]] %s0
  %10 = sst [smem:[#allocation4]] %s1
  $region1: #{forward.3} parent=0
    #allocation5 [shape = 'u8[1536]{0}', space=vmem, size = 0x800, scoped, tag = 'input window, operand 2, single buffered']
    #allocation6 [shape = 's32[1]{0}', space=sflag, size = 0x4, scoped, tag = 'scoped memory for forward.3']
    #allocation7 [shape = 's32[1]{0}', space=sflag, size = 0x4, scoped, tag = 'scoped memory for forward.3']
    #allocation8 [shape = 'u8[196608]{0}', space=vmem, size = 0x30000, scoped, tag = 'input window, operand 3, single buffered']
    #allocation9 [shape = 's32[1]{0}', space=sflag, size = 0x4, scoped, tag = 'scoped memory for forward.3']
    #allocation10 [shape = 'u8[1024]{0}', space=vmem, size = 0x400, scoped, tag = 'output window, operand 0, single buffered']
    %11 = vsyncpa [#allocation6], 0
    %12 = vsyncpa [#allocation9], 0
    %13 = vsyncpa [#allocation7], 0
    // Predicated region
    $region2: #{forward.3} parent=1 // pred_check
      _
    $region3: #{forward.3} parent=1 // pred_check_branch
      %15 = sbr.rel (0) target = $region5
    $region4: #{forward.3} parent=1 // pred_region
      %s16 = sadd.s32 0, 0
      %s17 = sld [smem:[#allocation3 + %s16]]
      %s18 = smul.u32 3, %s17
      %s20 = ssub.s32 48, 48
      %21 = vsyncadd [#allocation6], %s20
      %s22 = smul.addr %s18, 16
      %s23 = scalar_lea.hbm %s2, %s22
      %s25 = sshll.u32 [#allocation5], 4
      %s26 = int_to_ptr.vmem [resolvable:$true] %s25
      %28 = dma.hbm_to_vmem [thread:$0]  %s23, 48, %s26, [#allocation6]
    $region5: #{forward.3} parent=1 // pred_fallthru
      _
    // Predicated region
    $region6: #{forward.3} parent=1 // pred_check
      _
    $region7: #{forward.3} parent=1 // pred_check_branch
      %30 = sbr.rel (0) target = $region9
    $region8: #{forward.3} parent=1 // pred_region
      %s31 = sadd.s32 0, 0
      %s32 = sld [smem:[#allocation3 + %s31]]
      %s33 = smul.u32 48, %s32
      %s35 = ssub.s32 6144, 6144
      %36 = vsyncadd [#allocation9], %s35
      %s37 = smul.addr %s33, 2
      %s38 = smul.addr %s37, 64
      %s39 = scalar_lea.hbm %s3, %s38
      %s40 = sshll.u32 [#allocation8], 4
      %s41 = int_to_ptr.vmem [resolvable:$true] %s40
      %46 = dma.hbm_to_vmem [thread:$0]  %s39, 6144, %s41, [#allocation9], 128, 128, 8
    $region9: #{forward.3} parent=1 // pred_fallthru
      _
    // Predicated region
    $region10: #{forward.3} parent=1 // pred_check
      _
    $region11: #{forward.3} parent=1 // pred_check_branch
      %48 = sbr.rel (0) target = $region13
    $region12: #{forward.3} parent=1 // pred_region
      %49 = dma.done [#allocation6], 48
    $region13: #{forward.3} parent=1 // pred_fallthru
      _
    // Predicated region
    $region14: #{forward.3} parent=1 // pred_check
      _
    $region15: #{forward.3} parent=1 // pred_check_branch
      %51 = sbr.rel (0) target = $region17
    $region16: #{forward.3} parent=1 // pred_region
      %52 = dma.done [#allocation9], 6144
    $region17: #{forward.3} parent=1 // pred_fallthru
      _
    %s53 = sadd.s32 0, 0
    %s54 = sld [smem:[#allocation3 + %s53]]
    %s55 = smul.u32 3, %s54
    %s56 = sadd.s32 0, 0
    %s57 = sld [smem:[#allocation3 + %s56]]
    %s58 = smul.u32 48, %s57
    %p60 = scmp.eq.s32.totalorder 0, 0
    // Predicated region
    $region18: #{forward.3} parent=1 // pred_check
      %p61 = pneg %p60
    $region19: #{forward.3} parent=1 // pred_check_branch
      %63 = sbr.rel (%p61) target = $region21
    $region20: #{forward.3} parent=1 // pred_region
      %v64 = vlaneseq
      %vm65 = vcmp.ge.s32.totalorder %v64, 0
      %vm66 = vcmp.lt.s32.totalorder %v64, 256
      %vm67 = vmand %vm65, %vm66
      %68 = vst.msk [vmem:[#allocation10] sm:$0x3] %vm67, 0.0
    $region21: #{forward.3} parent=1 // pred_fallthru
      _
    %s69 = sld [smem:[#allocation4]]
    %p70 = scmp.lt.s32.totalorder 0, %s69
    // Predicated region
    $region22: #{forward.3} parent=1 // pred_check
      %p71 = pneg %p70
    $region23: #{forward.3} parent=1 // pred_check_branch
      %73 = sbr.rel (%p71) target = $region25
    $region24: #{forward.3} parent=1 // pred_region
      %v74 = vld [vmem:[#allocation10] sm:$0x3]
      %v75 = vld [vmem:[#allocation5] sm:$0x7]
      %v77 = vlaneseq
      %v78 = vshrl.u32 %v77, 7
      %v79 = vsub.s32 0, %v78
      %v80 = vrot.slane %v75, %v79
      %v81 = vlaneseq
      %v82 = vshrl.u32 %v81, 7
      %v83 = vsub.s32 1, %v82
      %v84 = vrot.slane %v75, %v83
      %v85 = vlaneseq
      %v86 = vshrl.u32 %v85, 7
      %v87 = vsub.s32 2, %v86
      %v88 = vrot.slane %v75, %v87
      %v92 = vpack.c.bf16 %v80, %v80
      %v93 = vpack.c.bf16 %v84, %v84
      %v94 = vpack.c.bf16 %v88, %v88
      %v95 = vld [vmem:[#allocation8] sm:$0xff]
      %v96 = vld [vmem:[#allocation8 + $0x8] sm:$0xff]
      %v97 = vld [vmem:[#allocation8 + $0x10] sm:$0xff]
      %v98 = vld [vmem:[#allocation8 + $0x18] sm:$0xff]
      %v99 = vld [vmem:[#allocation8 + $0x20] sm:$0xff]
      %v100 = vld [vmem:[#allocation8 + $0x28] sm:$0xff]
      %v101 = vld [vmem:[#allocation8 + $0x30] sm:$0xff]
      %v102 = vld [vmem:[#allocation8 + $0x38] sm:$0xff]
      %v103 = vld [vmem:[#allocation8 + $0x40] sm:$0xff]
      %v104 = vld [vmem:[#allocation8 + $0x48] sm:$0xff]
      %v105 = vld [vmem:[#allocation8 + $0x50] sm:$0xff]
      %v106 = vld [vmem:[#allocation8 + $0x58] sm:$0xff]
      %v107 = vld [vmem:[#allocation8 + $0x60] sm:$0xff]
      %v108 = vld [vmem:[#allocation8 + $0x68] sm:$0xff]
      %v109 = vld [vmem:[#allocation8 + $0x70] sm:$0xff]
      %v110 = vld [vmem:[#allocation8 + $0x78] sm:$0xff]
      %v111 = vld [vmem:[#allocation8 + $0x80] sm:$0xff]
      %v112 = vld [vmem:[#allocation8 + $0x88] sm:$0xff]
      %v113 = vld [vmem:[#allocation8 + $0x90] sm:$0xff]
      %v114 = vld [vmem:[#allocation8 + $0x98] sm:$0xff]
      %v115 = vld [vmem:[#allocation8 + $0xa0] sm:$0xff]
      %v116 = vld [vmem:[#allocation8 + $0xa8] sm:$0xff]
      %v117 = vld [vmem:[#allocation8 + $0xb0] sm:$0xff]
      %v118 = vld [vmem:[#allocation8 + $0xb8] sm:$0xff]
      %v119 = vld [vmem:[#allocation8 + $0xc0] sm:$0xff]
      %v120 = vld [vmem:[#allocation8 + $0xc8] sm:$0xff]
      %v121 = vld [vmem:[#allocation8 + $0xd0] sm:$0xff]
      %v122 = vld [vmem:[#allocation8 + $0xd8] sm:$0xff]
      %v123 = vld [vmem:[#allocation8 + $0xe0] sm:$0xff]
      %v124 = vld [vmem:[#allocation8 + $0xe8] sm:$0xff]
      %v125 = vld [vmem:[#allocation8 + $0xf0] sm:$0xff]
      %v126 = vld [vmem:[#allocation8 + $0xf8] sm:$0xff]
      %v127 = vld [vmem:[#allocation8 + $0x100] sm:$0xff]
      %v128 = vld [vmem:[#allocation8 + $0x108] sm:$0xff]
      %v129 = vld [vmem:[#allocation8 + $0x110] sm:$0xff]
      %v130 = vld [vmem:[#allocation8 + $0x118] sm:$0xff]
      %v131 = vld [vmem:[#allocation8 + $0x120] sm:$0xff]
      %v132 = vld [vmem:[#allocation8 + $0x128] sm:$0xff]
      %v133 = vld [vmem:[#allocation8 + $0x130] sm:$0xff]
      %v134 = vld [vmem:[#allocation8 + $0x138] sm:$0xff]
      %v135 = vld [vmem:[#allocation8 + $0x140] sm:$0xff]
      %v136 = vld [vmem:[#allocation8 + $0x148] sm:$0xff]
      %v137 = vld [vmem:[#allocation8 + $0x150] sm:$0xff]
      %v138 = vld [vmem:[#allocation8 + $0x158] sm:$0xff]
      %v139 = vld [vmem:[#allocation8 + $0x160] sm:$0xff]
      %v140 = vld [vmem:[#allocation8 + $0x168] sm:$0xff]
      %v141 = vld [vmem:[#allocation8 + $0x170] sm:$0xff]
      %v142 = vld [vmem:[#allocation8 + $0x178] sm:$0xff]
      %v191 = vunpack.c.l.b16 %v95
      %v192 = vunpack.c.h.b16 %v95
      %v193 = vunpack.c.l.b16 %v96
      %v194 = vunpack.c.h.b16 %v96
      %v195 = vunpack.c.l.b16 %v97
      %v196 = vunpack.c.h.b16 %v97
      %v197 = vunpack.c.l.b16 %v98
      %v198 = vunpack.c.h.b16 %v98
      %v199 = vunpack.c.l.b16 %v99
      %v200 = vunpack.c.h.b16 %v99
      %v201 = vunpack.c.l.b16 %v100
      %v202 = vunpack.c.h.b16 %v100
      %v203 = vunpack.c.l.b16 %v101
      %v204 = vunpack.c.h.b16 %v101
      %v205 = vunpack.c.l.b16 %v102
      %v206 = vunpack.c.h.b16 %v102
      %v207 = vunpack.c.l.b16 %v103
      %v208 = vunpack.c.h.b16 %v103
      %v209 = vunpack.c.l.b16 %v104
      %v210 = vunpack.c.h.b16 %v104
      %v211 = vunpack.c.l.b16 %v105
      %v212 = vunpack.c.h.b16 %v105
      %v213 = vunpack.c.l.b16 %v106
      %v214 = vunpack.c.h.b16 %v106
      %v215 = vunpack.c.l.b16 %v107
      %v216 = vunpack.c.h.b16 %v107
      %v217 = vunpack.c.l.b16 %v108
      %v218 = vunpack.c.h.b16 %v108
      %v219 = vunpack.c.l.b16 %v109
      %v220 = vunpack.c.h.b16 %v109
      %v221 = vunpack.c.l.b16 %v110
      %v222 = vunpack.c.h.b16 %v110
      %v223 = vunpack.c.l.b16 %v111
      %v224 = vunpack.c.h.b16 %v111
      %v225 = vunpack.c.l.b16 %v112
      %v226 = vunpack.c.h.b16 %v112
      %v227 = vunpack.c.l.b16 %v113
      %v228 = vunpack.c.h.b16 %v113
      %v229 = vunpack.c.l.b16 %v114
      %v230 = vunpack.c.h.b16 %v114
      %v231 = vunpack.c.l.b16 %v115
      %v232 = vunpack.c.h.b16 %v115
      %v233 = vunpack.c.l.b16 %v116
      %v234 = vunpack.c.h.b16 %v116
      %v235 = vunpack.c.l.b16 %v117
      %v236 = vunpack.c.h.b16 %v117
      %v237 = vunpack.c.l.b16 %v118
      %v238 = vunpack.c.h.b16 %v118
      %v239 = vunpack.c.l.b16 %v119
      %v240 = vunpack.c.h.b16 %v119
      %v241 = vunpack.c.l.b16 %v120
      %v242 = vunpack.c.h.b16 %v120
      %v243 = vunpack.c.l.b16 %v121
      %v244 = vunpack.c.h.b16 %v121
      %v245 = vunpack.c.l.b16 %v122
      %v246 = vunpack.c.h.b16 %v122
      %v247 = vunpack.c.l.b16 %v123
      %v248 = vunpack.c.h.b16 %v123
      %v249 = vunpack.c.l.b16 %v124
      %v250 = vunpack.c.h.b16 %v124
      %v251 = vunpack.c.l.b16 %v125
      %v252 = vunpack.c.h.b16 %v125
      %v253 = vunpack.c.l.b16 %v126
      %v254 = vunpack.c.h.b16 %v126
      %v255 = vunpack.c.l.b16 %v127
      %v256 = vunpack.c.h.b16 %v127
      %v257 = vunpack.c.l.b16 %v128
      %v258 = vunpack.c.h.b16 %v128
      %v259 = vunpack.c.l.b16 %v129
      %v260 = vunpack.c.h.b16 %v129
      %v261 = vunpack.c.l.b16 %v130
      %v262 = vunpack.c.h.b16 %v130
      %v263 = vunpack.c.l.b16 %v131
      %v264 = vunpack.c.h.b16 %v131
      %v265 = vunpack.c.l.b16 %v132
      %v266 = vunpack.c.h.b16 %v132
      %v267 = vunpack.c.l.b16 %v133
      %v268 = vunpack.c.h.b16 %v133
      %v269 = vunpack.c.l.b16 %v134
      %v270 = vunpack.c.h.b16 %v134
      %v271 = vunpack.c.l.b16 %v135
      %v272 = vunpack.c.h.b16 %v135
      %v273 = vunpack.c.l.b16 %v136
      %v274 = vunpack.c.h.b16 %v136
      %v275 = vunpack.c.l.b16 %v137
      %v276 = vunpack.c.h.b16 %v137
      %v277 = vunpack.c.l.b16 %v138
      %v278 = vunpack.c.h.b16 %v138
      %v279 = vunpack.c.l.b16 %v139
      %v280 = vunpack.c.h.b16 %v139
      %v281 = vunpack.c.l.b16 %v140
      %v282 = vunpack.c.h.b16 %v140
      %v283 = vunpack.c.l.b16 %v141
      %v284 = vunpack.c.h.b16 %v141
      %v285 = vunpack.c.l.b16 %v142
      %v286 = vunpack.c.h.b16 %v142
      %v287 = vpack.c.b16 %v193, %v191
      %v288 = vpack.c.b16 %v194, %v192
      %v289 = vpack.c.b16 %v197, %v195
      %v290 = vpack.c.b16 %v198, %v196
      %v291 = vpack.c.b16 %v201, %v199
      %v292 = vpack.c.b16 %v202, %v200
      %v293 = vpack.c.b16 %v205, %v203
      %v294 = vpack.c.b16 %v206, %v204
      %v295 = vpack.c.b16 %v209, %v207
      %v296 = vpack.c.b16 %v210, %v208
      %v297 = vpack.c.b16 %v213, %v211
      %v298 = vpack.c.b16 %v214, %v212
      %v299 = vpack.c.b16 %v217, %v215
      %v300 = vpack.c.b16 %v218, %v216
      %v301 = vpack.c.b16 %v221, %v219
      %v302 = vpack.c.b16 %v222, %v220
      %v303 = vpack.c.b16 %v225, %v223
      %v304 = vpack.c.b16 %v226, %v224
      %v305 = vpack.c.b16 %v229, %v227
      %v306 = vpack.c.b16 %v230, %v228
      %v307 = vpack.c.b16 %v233, %v231
      %v308 = vpack.c.b16 %v234, %v232
      %v309 = vpack.c.b16 %v237, %v235
      %v310 = vpack.c.b16 %v238, %v236
      %v311 = vpack.c.b16 %v241, %v239
      %v312 = vpack.c.b16 %v242, %v240
      %v313 = vpack.c.b16 %v245, %v243
      %v314 = vpack.c.b16 %v246, %v244
      %v315 = vpack.c.b16 %v249, %v247
      %v316 = vpack.c.b16 %v250, %v248
      %v317 = vpack.c.b16 %v253, %v251
      %v318 = vpack.c.b16 %v254, %v252
      %v319 = vpack.c.b16 %v257, %v255
      %v320 = vpack.c.b16 %v258, %v256
      %v321 = vpack.c.b16 %v261, %v259
      %v322 = vpack.c.b16 %v262, %v260
      %v323 = vpack.c.b16 %v265, %v263
      %v324 = vpack.c.b16 %v266, %v264
      %v325 = vpack.c.b16 %v269, %v267
      %v326 = vpack.c.b16 %v270, %v268
      %v327 = vpack.c.b16 %v273, %v271
      %v328 = vpack.c.b16 %v274, %v272
      %v329 = vpack.c.b16 %v277, %v275
      %v330 = vpack.c.b16 %v278, %v276
      %v331 = vpack.c.b16 %v281, %v279
      %v332 = vpack.c.b16 %v282, %v280
      %v333 = vpack.c.b16 %v285, %v283
      %v334 = vpack.c.b16 %v286, %v284
      %383 = vmatprep.subr.bf16.mxu0 %v288
      %384 = vmatpush1.bf16.msra.mxu0 %v287
      %385 = vmatprep.subr.bf16.mxu0 %v290
      %386 = vmatpush1.bf16.msra.mxu0 %v289
      %387 = vmatprep.subr.bf16.mxu0 %v292
      %388 = vmatpush1.bf16.msra.mxu0 %v291
      %389 = vmatprep.subr.bf16.mxu0 %v294
      %390 = vmatpush1.bf16.msra.mxu0 %v293
      %391 = vmatprep.subr.bf16.mxu0 %v296
      %392 = vmatpush1.bf16.msra.mxu0 %v295
      %393 = vmatprep.subr.bf16.mxu0 %v298
      %394 = vmatpush1.bf16.msra.mxu0 %v297
      %395 = vmatprep.subr.bf16.mxu0 %v300
      %396 = vmatpush1.bf16.msra.mxu0 %v299
      %397 = vmatprep.subr.bf16.mxu0 %v302
      %398 = vmatpush1.bf16.msra.mxu0 %v301
      %399 = vmatprep.subr.bf16.mxu0 %v304
      %400 = vmatpush1.bf16.msra.mxu0 %v303
      %401 = vmatprep.subr.bf16.mxu0 %v306
      %402 = vmatpush1.bf16.msra.mxu0 %v305
      %403 = vmatprep.subr.bf16.mxu0 %v308
      %404 = vmatpush1.bf16.msra.mxu0 %v307
      %405 = vmatprep.subr.bf16.mxu0 %v310
      %406 = vmatpush1.bf16.msra.mxu0 %v309
      %407 = vmatprep.subr.bf16.mxu0 %v312
      %408 = vmatpush1.bf16.msra.mxu0 %v311
      %409 = vmatprep.subr.bf16.mxu0 %v314
      %410 = vmatpush1.bf16.msra.mxu0 %v313
      %411 = vmatprep.subr.bf16.mxu0 %v316
      %412 = vmatpush1.bf16.msra.mxu0 %v315
      %413 = vmatprep.subr.bf16.mxu0 %v318
      %414 = vmatpush1.bf16.msra.mxu0 %v317
      %415 = vmatprep.mubr.bf16.mxu0 %v93
      %416 = vmatmul.mubr.bf16.gmra.mrb[0].mxu0 %v92
      %v417 = vpop.f32.mrb[0].mxu0
      %v418 = vadd.f32 0.0, %v417
      %v419 = vpop.f32.mrb[0].mxu0
      %v420 = vadd.f32 0.0, %v419
      %v421 = vpop.f32.mrb[0].mxu0
      %v422 = vpop.f32.mrb[0].mxu0
      %423 = vdwg.mxu0
      %424 = vmatprep.subr.bf16.mxu0 %v320
      %425 = vmatpush1.bf16.msra.mxu0 %v319
      %426 = vmatprep.subr.bf16.mxu0 %v322
      %427 = vmatpush1.bf16.msra.mxu0 %v321
      %428 = vmatprep.subr.bf16.mxu0 %v324
      %429 = vmatpush1.bf16.msra.mxu0 %v323
      %430 = vmatprep.subr.bf16.mxu0 %v326
      %431 = vmatpush1.bf16.msra.mxu0 %v325
      %432 = vmatprep.subr.bf16.mxu0 %v328
      %433 = vmatpush1.bf16.msra.mxu0 %v327
      %434 = vmatprep.subr.bf16.mxu0 %v330
      %435 = vmatpush1.bf16.msra.mxu0 %v329
      %436 = vmatprep.subr.bf16.mxu0 %v332
      %437 = vmatpush1.bf16.msra.mxu0 %v331
      %438 = vmatprep.subr.bf16.mxu0 %v334
      %439 = vmatpush1.bf16.msra.mxu0 %v333
      %440 = vmatprep.subr.bf16.mxu0 0
      %441 = vmatpush1.bf16.msra.mxu0 0
      %442 = vmatprep.subr.bf16.mxu0 0
      %443 = vmatpush1.bf16.msra.mxu0 0
      %444 = vmatprep.subr.bf16.mxu0 0
      %445 = vmatpush1.bf16.msra.mxu0 0
      %446 = vmatprep.subr.bf16.mxu0 0
      %447 = vmatpush1.bf16.msra.mxu0 0
      %448 = vmatprep.subr.bf16.mxu0 0
      %449 = vmatpush1.bf16.msra.mxu0 0
      %450 = vmatprep.subr.bf16.mxu0 0
      %451 = vmatpush1.bf16.msra.mxu0 0
      %452 = vmatprep.subr.bf16.mxu0 0
      %453 = vmatpush1.bf16.msra.mxu0 0
      %454 = vmatprep.subr.bf16.mxu0 0
      %455 = vmatpush1.bf16.msra.mxu0 0
      %456 = vmatprep.mubr.bf16.mxu0 0
      %457 = vmatmul.mubr.bf16.gmra.mrb[0].mxu0 %v94
      %v458 = vpop.f32.mrb[0].mxu0
      %v459 = vadd.f32 %v418, %v458
      %v460 = vpop.f32.mrb[0].mxu0
      %v461 = vadd.f32 %v420, %v460
      %v462 = vpop.f32.mrb[0].mxu0
      %v463 = vpop.f32.mrb[0].mxu0
      %464 = vdwg.mxu0
      %v467 = vcombine.low %v459, %v461
      %v469 = vunpack.c.l.s4 1966171168
      %v470 = vunpack.c.0.s8 %v469
      %v471 = vlaneseq
      %v472 = vshrl.u32 %v471, 7
      %v473 = vsub.s32 %v470, %v472
      %v474 = vrot.slane %v467, %v473
      %v476 = vunpack.c.l.s4 1966171168
      %v477 = vunpack.c.0.s8 %v476
      %v478 = vlaneseq
      %v479 = vshrl.u32 %v478, 7
      %v480 = vsub.s32 %v477, %v479
      %v481 = vrot.slane %v474, %v480
      %v483 = vadd.f32 %v74, %v481
      %v484 = vlaneseq
      %vm485 = vcmp.ge.s32.totalorder %v484, 0
      %vm486 = vcmp.lt.s32.totalorder %v484, 256
      %vm487 = vmand %vm485, %vm486
      %488 = vst.msk [vmem:[#allocation10] sm:$0x3] %vm487, %v483
    $region25: #{forward.3} parent=1 // pred_fallthru
      _
    // Predicated region
    $region26: #{forward.3} parent=1 // pred_check
      _
    $region27: #{forward.3} parent=1 // pred_check_branch
      %490 = sbr.rel (0) target = $region29
    $region28: #{forward.3} parent=1 // pred_region
      %s492 = ssub.s32 32, 32
      %493 = vsyncadd [#allocation7], %s492
      %s495 = sshll.u32 [#allocation10], 4
      %s496 = int_to_ptr.vmem [resolvable:$true] %s495
      %498 = dma.vmem_to_hbm [thread:$0]  %s496, 32, %s4, [#allocation7]
    $region29: #{forward.3} parent=1 // pred_fallthru
      _
    // Predicated region
    $region30: #{forward.3} parent=1 // pred_check
      _
    $region31: #{forward.3} parent=1 // pred_check_branch
      %500 = sbr.rel (0) target = $region33
    $region32: #{forward.3} parent=1 // pred_region
      %501 = dma.done [#allocation7], 32
    $region33: #{forward.3} parent=1 // pred_fallthru
      _
    %502 = vsyncpa [#allocation6], 1
    %503 = vsyncpa [#allocation9], 1
    %504 = vsyncpa [#allocation7], 1

</llo_original>
